<compile_context>
chip_gen: v5e
topology: v5e:2x2
jax: 0.10.0
libtpu: 0.0.40
codegen_flags: <defaults>
</compile_context>

<pallas_src>
import jax
import jax.numpy as jnp
from jax.experimental import pallas as pl
from jax.experimental.pallas import tpu as pltpu


# ---------------------------------------------------------------------------
# Kernels
# ---------------------------------------------------------------------------
def _fs_kernel_train(sigma_ref, x_ref, mu_ref, noise_ref, o_ref):
    # Gate math in f32 (matches the reference); it is (1, td) VALU work that
    # rides for free under a mem-bound kernel.
    sigma = sigma_ref[0]
    z = mu_ref[...].astype(jnp.float32) + sigma * noise_ref[...].astype(jnp.float32)
    gate = jnp.clip(z, 0.0, 1.0)  # hard sigmoid
    # Multiply in x's native dtype: avoids an f32 round-trip of the whole
    # (tb, td) tile on bf16 inputs (v6e/v7x bf16 VALU); identical for f32.
    o_ref[...] = x_ref[...] * gate.astype(x_ref.dtype)


def _fs_kernel_eval(x_ref, mu_ref, o_ref):
    # Eval mode: noise term is exactly zero, so the noise operand is dropped.
    gate = jnp.clip(mu_ref[...].astype(jnp.float32), 0.0, 1.0)
    o_ref[...] = x_ref[...] * gate.astype(x_ref.dtype)


# ---------------------------------------------------------------------------
# Tiling / budgeting helpers
# ---------------------------------------------------------------------------
def _round_up(x, m):
    return ((x + m - 1) // m) * m


def _sublane_for_itemsize(itemsize):
    # Native packed sublane tile: 8 rows f32, 16 rows bf16, 32 rows int8/fp8.
    return max(8, 32 // max(itemsize, 1))


def _vmem_budget():
    """(per-step tile budget, scoped vmem limit) — generation aware."""
    try:
        cap = getattr(pltpu.get_tpu_info(), "vmem_capacity_bytes", None)
    except Exception:  # no TPU info available at trace time
        cap = None
    if cap is None:
        cap = 64 * 1024 * 1024  # conservative: v7x has 64 MiB per TensorCore
    if cap >= 100 * 1024 * 1024:
        # v5e / v6e: 128 MiB physical VMEM -> bigger tiles, fewer grid steps.
        return 48 * 1024 * 1024, 64 * 1024 * 1024
    # v7x (64 MiB per TC): stay conservative.
    return 24 * 1024 * 1024, 32 * 1024 * 1024


def _pick_tiles(B, D, itemsize, budget, sublane, max_tile_rows=None):
    """Pick (tb, td). td == D keeps the lane axis whole (1-D grid)."""
    # Per grid step: 2 pipeline buffers x (x tile + out tile) = 4 tile copies.
    max_block_elems = max(budget // (4 * itemsize), sublane * 128)

    if D * sublane <= max_block_elems:
        td = D  # whole D per block -> lane-dense stores, 1-D grid
    else:
        # Very wide D: tile the lane axis in multiples of 128 (2-D grid).
        td = max(128, ((max_block_elems // sublane) // 128) * 128)

    tb = max(sublane, ((max_block_elems // td) // sublane) * sublane)
    if max_tile_rows is not None:
        tb = min(tb, max(sublane, (max_tile_rows // sublane) * sublane))

    if tb >= B:
        if td == D and B > sublane:
            # Guarantee >= 2 grid steps so both v7x TensorCores get work
            # (no-op cost on single-TC v5e/v6e).
            tb = _round_up(pl.cdiv(B, 2), sublane)
        else:
            tb = B  # single full-batch block (legal regardless of B % sublane)
    return tb, td


# ---------------------------------------------------------------------------
# Wrapper
# ---------------------------------------------------------------------------
def feature_selector(prev_x, mu, noise=None, *, sigma, training,
                     max_tile_rows=None, pad_lanes=True, donate_prev_x=False):
    """Pallas implementation of FeatureSelector.forward.

    prev_x: (B, D); mu, noise: (D,).
    out = prev_x * clamp(mu + sigma * noise * training, 0, 1)
    """
    B, D = prev_x.shape
    dtype = prev_x.dtype
    itemsize = jnp.dtype(dtype).itemsize
    sublane = _sublane_for_itemsize(itemsize)

    # Ragged / narrow D -> pad to a multiple of 128 so the output stays
    # lane-dense (unmasked vst), then slice back after the kernel.
    Dp = _round_up(D, 128) if (pad_lanes and D % 128 != 0) else D

    budget, vmem_limit = _vmem_budget()
    tb, td = _pick_tiles(B, Dp, itemsize, budget, sublane, max_tile_rows)

    mu2 = mu.reshape(1, D)
    x_in = prev_x
    if Dp != D:
        x_in = jnp.pad(prev_x, ((0, 0), (0, Dp - D)))
        mu2 = jnp.pad(mu2, ((0, 0), (0, Dp - D)))

    if td == Dp:
        grid = (pl.cdiv(B, tb),)
        x_spec = pl.BlockSpec((tb, td), lambda i: (i, 0))
        vec_spec = pl.BlockSpec((1, td), lambda i: (0, 0))
        out_spec = pl.BlockSpec((tb, td), lambda i: (i, 0))
        dims = ("parallel",)
    else:
        grid = (pl.cdiv(B, tb), pl.cdiv(Dp, td))
        x_spec = pl.BlockSpec((tb, td), lambda i, j: (i, j))
        vec_spec = pl.BlockSpec((1, td), lambda i, j: (0, j))
        out_spec = pl.BlockSpec((tb, td), lambda i, j: (i, j))
        dims = ("parallel", "parallel")

    cparams = pltpu.CompilerParams(
        dimension_semantics=dims,           # megacore sharding on v7x
        vmem_limit_bytes=vmem_limit,
    )
    out_shape = jax.ShapeDtypeStruct((B, Dp), dtype)

    n_vecs = 2 if training else 1
    cost = pl.CostEstimate(
        flops=2 * B * Dp,
        transcendentals=0,
        bytes_accessed=2 * B * Dp * itemsize + n_vecs * Dp * 4,
    )

    if training:
        if noise is None:
            raise ValueError("training=True requires a noise vector")
        noise2 = noise.reshape(1, D)
        if Dp != D:
            noise2 = jnp.pad(noise2, ((0, 0), (0, Dp - D)))
        # sigma as an SMEM scalar: no recompile when sigma changes at runtime.
        sigma_arr = jnp.asarray([sigma], dtype=jnp.float32)
        smem_spec = pl.BlockSpec(memory_space=pltpu.MemorySpace.SMEM)
        kwargs = {"input_output_aliases": {1: 0}} if donate_prev_x else {}
        out = pl.pallas_call(
            _fs_kernel_train,
            out_shape=out_shape,
            grid=grid,
            in_specs=[smem_spec, x_spec, vec_spec, vec_spec],
            out_specs=out_spec,
            compiler_params=cparams,
            cost_estimate=cost,
            **kwargs,
        )(sigma_arr, x_in, mu2, noise2)
    else:
        kwargs = {"input_output_aliases": {0: 0}} if donate_prev_x else {}
        out = pl.pallas_call(
            _fs_kernel_eval,
            out_shape=out_shape,
            grid=grid,
            in_specs=[x_spec, vec_spec],
            out_specs=out_spec,
            compiler_params=cparams,
            cost_estimate=cost,
            **kwargs,
        )(x_in, mu2)

    if Dp != D:
        out = out[:, :D]
    return out


def feature_selector_ref(prev_x, mu, noise, *, sigma, training):
    z = mu.astype(jnp.float32) + sigma * noise.astype(jnp.float32) * (1.0 if training else 0.0)
    gate = jnp.clip(z, 0.0, 1.0)
    return (prev_x.astype(jnp.float32) * gate[None, :]).astype(prev_x.dtype)


if __name__ == "__main__":
    key = jax.random.PRNGKey(0)
    k_x, k_mu, k_noise, k_x2, k_x3 = jax.random.split(key, 5)
    sigma = 0.5

    # --- small shape consistent with the module: (B, D) = (8, 128) ------------
    # NOTE: at this size a standalone Pallas kernel is launch-overhead dominated;
    # in a real model this op should be left to XLA fusion. Kept here as the test.
    B, D = 8, 128
    x = jax.random.normal(k_x, (B, D), dtype=jnp.float32)
    mu = 0.5 + 0.01 * jax.random.normal(k_mu, (D,), dtype=jnp.float32)
    noise = jax.random.normal(k_noise, (D,), dtype=jnp.float32)

    out = feature_selector(x, mu, noise, sigma=sigma, training=True)
    out = jax.block_until_ready(out)
    ref = feature_selector_ref(x, mu, noise, sigma=sigma, training=True)
    assert out.shape == (B, D)
    assert jnp.allclose(out, ref, atol=1e-6, rtol=1e-6), "train-mode mismatch vs reference"

    # Eval mode: gate = clamp(mu, 0, 1); noise operand dropped from the kernel.
    out_eval = jax.block_until_ready(
        feature_selector(x, mu, noise, sigma=sigma, training=False))
    ref_eval = feature_selector_ref(x, mu, noise, sigma=sigma, training=False)
    assert jnp.allclose(out_eval, ref_eval, atol=1e-6, rtol=1e-6), "eval-mode mismatch"

    # --- multi-step batch-tiled path (non-divisible B, partial last tile) -----
    B2, D2 = 300, 256
    k_mu2, k_noise2 = jax.random.split(k_noise)
    x2 = jax.random.normal(k_x2, (B2, D2), dtype=jnp.float32)
    mu_b = 0.5 + 0.01 * jax.random.normal(k_mu2, (D2,), dtype=jnp.float32)
    noise_b = jax.random.normal(k_noise2, (D2,), dtype=jnp.float32)
    out2 = jax.block_until_ready(
        feature_selector(x2, mu_b, noise_b, sigma=sigma, training=True, max_tile_rows=128))
    ref2 = feature_selector_ref(x2, mu_b, noise_b, sigma=sigma, training=True)
    assert jnp.allclose(out2, ref2, atol=1e-6, rtol=1e-6), "tiled-path mismatch"

    # --- bf16 + ragged D: lane-padding path, bf16-native multiply, 2-step grid -
    B3, D3 = 64, 200
    k_mu3, k_noise3 = jax.random.split(k_noise2)
    x3 = jax.random.normal(k_x3, (B3, D3), dtype=jnp.bfloat16)
    mu_c = 0.5 + 0.01 * jax.random.normal(k_mu3, (D3,), dtype=jnp.float32)
    noise_c = jax.random.normal(k_noise3, (D3,), dtype=jnp.float32)
    out3 = jax.block_until_ready(
        feature_selector(x3, mu_c, noise_c, sigma=sigma, training=True))
    ref3 = feature_selector_ref(x3, mu_c, noise_c, sigma=sigma, training=True)
    assert out3.shape == (B3, D3) and out3.dtype == jnp.bfloat16
    assert jnp.allclose(out3.astype(jnp.float32), ref3.astype(jnp.float32),
                        atol=2e-2, rtol=2e-2), "bf16 ragged-D mismatch"

    # TODO(synk): regularizer() (Gaussian CDF via erf) is not part of forward();
    # it is left out of the kernel. Noise resampling (torch .normal_()) is done
    # by the caller supplying a pre-sampled noise vector.
    print("KERNEL_OK")
</pallas_src>

<mosaic_0001>
module attributes {stable_mosaic.version = 11 : i64} {
  func.func @_fs_kernel_train(%arg0: i32, %arg1: memref<1xf32, #tpu.memory_space<smem>>, %arg2: memref<8x128xf32, #tpu.memory_space<vmem>>, %arg3: memref<1x128xf32, #tpu.memory_space<vmem>>, %arg4: memref<1x128xf32, #tpu.memory_space<vmem>>, %arg5: memref<8x128xf32, #tpu.memory_space<vmem>>) attributes {dimension_semantics = [#tpu.dimension_semantics<parallel>], iteration_bounds = array<i64: 1>, scalar_prefetch = 0 : i64, scratch_operands = 0 : i64, tpu.core_type = #tpu.core_type<tc>, window_params = [{transform_indices = @transform_0, window_bounds = array<i64: 1>}, {transform_indices = @transform_1, window_bounds = array<i64: 8, 128>}, {pipeline_mode = #tpu.pipeline_mode<synchronous>, transform_indices = @transform_2, window_bounds = array<i64: 1, 128>}, {pipeline_mode = #tpu.pipeline_mode<synchronous>, transform_indices = @transform_3, window_bounds = array<i64: 1, 128>}, {transform_indices = @transform_4, window_bounds = array<i64: 8, 128>}]} {
    %c0 = arith.constant 0 : index
    %0 = memref.load %arg1[%c0] : memref<1xf32, #tpu.memory_space<smem>>
    %c0_0 = arith.constant 0 : index
    %c0_1 = arith.constant 0 : index
    %1 = vector.load %arg3[%c0_0, %c0_1] : memref<1x128xf32, #tpu.memory_space<vmem>>, vector<1x128xf32>
    %c0_2 = arith.constant 0 : index
    %c0_3 = arith.constant 0 : index
    %2 = vector.load %arg4[%c0_2, %c0_3] : memref<1x128xf32, #tpu.memory_space<vmem>>, vector<1x128xf32>
    %3 = vector.broadcast %0 : f32 to vector<1x128xf32>
    %4 = arith.mulf %3, %2 : vector<1x128xf32>
    %5 = arith.addf %1, %4 : vector<1x128xf32>
    %cst = arith.constant 0.000000e+00 : f32
    %cst_4 = arith.constant 1.000000e+00 : f32
    %6 = vector.broadcast %cst : f32 to vector<1x128xf32>
    %7 = arith.maximumf %6, %5 : vector<1x128xf32>
    %8 = vector.broadcast %cst_4 : f32 to vector<1x128xf32>
    %9 = arith.minimumf %8, %7 : vector<1x128xf32>
    %c0_5 = arith.constant 0 : index
    %c0_6 = arith.constant 0 : index
    %10 = vector.load %arg2[%c0_5, %c0_6] : memref<8x128xf32, #tpu.memory_space<vmem>>, vector<8x128xf32>
    %11 = vector.broadcast %9 : vector<1x128xf32> to vector<8x128xf32>
    %12 = arith.mulf %10, %11 : vector<8x128xf32>
    %c0_7 = arith.constant 0 : index
    %c0_8 = arith.constant 0 : index
    %13 = vector.load %arg5[%c0_7, %c0_8] : memref<8x128xf32, #tpu.memory_space<vmem>>, vector<8x128xf32>
    tpu.vector_store %arg5[%c0_7, %c0_8], %12 {strides = array<i32>} : memref<8x128xf32, #tpu.memory_space<vmem>>, vector<8x128xf32>,
    return
  }
  func.func @transform_0(%arg0: i32) -> i32 {
    %c0_i32 = arith.constant 0 : i32
    %c0_i32_0 = arith.constant 0 : i32
    return %c0_i32 : i32
  }
  func.func @transform_1(%arg0: i32) -> (i32, i32) {
    %c0_i32 = arith.constant 0 : i32
    %c0_i32_0 = arith.constant 0 : i32
    return %arg0, %c0_i32 : i32, i32
  }
  func.func @transform_2(%arg0: i32) -> (i32, i32) {
    %c0_i32 = arith.constant 0 : i32
    %c0_i32_0 = arith.constant 0 : i32
    %c0_i32_1 = arith.constant 0 : i32
    return %c0_i32, %c0_i32_0 : i32, i32
  }
  func.func @transform_3(%arg0: i32) -> (i32, i32) {
    %c0_i32 = arith.constant 0 : i32
    %c0_i32_0 = arith.constant 0 : i32
    %c0_i32_1 = arith.constant 0 : i32
    return %c0_i32, %c0_i32_0 : i32, i32
  }
  func.func @transform_4(%arg0: i32) -> (i32, i32) {
    %c0_i32 = arith.constant 0 : i32
    %c0_i32_0 = arith.constant 0 : i32
    return %arg0, %c0_i32 : i32, i32
  }
}

</mosaic_0001>

<llo_original>
// kernel: tpu_custom_call.1
$region0: #{tpu_custom_call.1}
  #allocation0 [shape = 'u32[]', space=smem, size = 0x4, offset = 0x4, fixed_abs, tag = 'smem constant byte address 0x4 - core index']
  #allocation1 [shape = 'u32[72,128]{1,0:T(1,128)}', space=vmem, size = 0x9000, scoped, tag = 'internal scratch']
  #allocation2 [shape = 'f32[1]{0:T(128)S(6)}', space=smem, size = 0x200, scoped, tag = 'scoped memory for tpu_custom_call.1']
  %s0 = inlined_call_operand.<no memory space> [shape: f32[1], index: 0, kind: input, shape index: {}]
  %s1 = inlined_call_operand.hbm [shape: f32[8,128], index: 1, kind: input, shape index: {}]
  %s2 = inlined_call_operand.vmem [shape: f32[1,128], index: 2, kind: input, shape index: {}]
  %s3 = inlined_call_operand.vmem [shape: f32[1,128], index: 3, kind: input, shape index: {}]
  %s4 = inlined_call_operand.hbm [shape: f32[8,128], index: 4, kind: output, shape index: {}]
  %s5 = sld [smem:[#allocation0]]
  $region30: #{tpu_custom_call.1} parent=0
    _
  %s7 = ssub.s32 1, %s5
  %s8 = scalar_select 0, %s7, %s5
  %9 = sst [smem:[#allocation2]] %s0
  $region1: #{tpu_custom_call.1} parent=0
    #allocation3 [shape = 'u8[4096]{0}', space=vmem, size = 0x1000, scoped, tag = 'input window, operand 1, single buffered']
    #allocation4 [shape = 's32[1]{0}', space=sflag, size = 0x4, scoped, tag = 'scoped memory for tpu_custom_call.1']
    #allocation5 [shape = 's32[1]{0}', space=sflag, size = 0x4, scoped, tag = 'scoped memory for tpu_custom_call.1']
    #allocation6 [shape = 'u8[4096]{0}', space=vmem, size = 0x1000, scoped, tag = 'output window, operand 0, single buffered']
    %10 = vsyncpa [#allocation4], 0
    %11 = vsyncpa [#allocation5], 0
    // Predicated region
    $region2: #{tpu_custom_call.1} parent=1 // pred_check
      _
    $region3: #{tpu_custom_call.1} parent=1 // pred_check_branch
      %13 = sbr.rel (0) target = $region5
    $region4: #{tpu_custom_call.1} parent=1 // pred_region
      _
    $region5: #{tpu_custom_call.1} parent=1 // pred_fallthru
      _
    // Predicated region
    $region6: #{tpu_custom_call.1} parent=1 // pred_check
      _
    $region7: #{tpu_custom_call.1} parent=1 // pred_check_branch
      %15 = sbr.rel (0) target = $region9
    $region8: #{tpu_custom_call.1} parent=1 // pred_region
      %17 = vsyncadd [#allocation4], 0
      %s19 = sshll.u32 %s1, 4
      %s20 = int_to_ptr.hbm [resolvable:$true] %s19
      %s21 = sshll.u32 [#allocation3], 4
      %s22 = int_to_ptr.vmem [resolvable:$true] %s21
      %24 = dma.hbm_to_vmem [thread:$0]  %s20, 128, %s22, [#allocation4]
    $region9: #{tpu_custom_call.1} parent=1 // pred_fallthru
      _
    // Predicated region
    $region10: #{tpu_custom_call.1} parent=1 // pred_check
      _
    $region11: #{tpu_custom_call.1} parent=1 // pred_check_branch
      %26 = sbr.rel (0) target = $region13
    $region12: #{tpu_custom_call.1} parent=1 // pred_region
      _
    $region13: #{tpu_custom_call.1} parent=1 // pred_fallthru
      _
    // Predicated region
    $region14: #{tpu_custom_call.1} parent=1 // pred_check
      _
    $region15: #{tpu_custom_call.1} parent=1 // pred_check_branch
      %28 = sbr.rel (0) target = $region17
    $region16: #{tpu_custom_call.1} parent=1 // pred_region
      _
    $region17: #{tpu_custom_call.1} parent=1 // pred_fallthru
      _
    // Predicated region
    $region18: #{tpu_custom_call.1} parent=1 // pred_check
      _
    $region19: #{tpu_custom_call.1} parent=1 // pred_check_branch
      %30 = sbr.rel (0) target = $region21
    $region20: #{tpu_custom_call.1} parent=1 // pred_region
      %32 = dma.done [#allocation4], 128
    $region21: #{tpu_custom_call.1} parent=1 // pred_fallthru
      _
    %s33 = sld [smem:[#allocation2]]
    %v34 = vld [vmem:[%s2] sm:$0x1]
    %v35 = vld [vmem:[%s3] sm:$0x1]
    %v36 = vstv %s33
    %v37 = vmul.f32 %v36, %v35
    %v38 = vadd.f32 %v34, %v37
    %v39 = vmax.f32 %v38, 0.0
    %v40 = vmin.f32 %v39, 1.0
    %v41 = vld [vmem:[#allocation3] sm:$0xff]
    %v43 = vperm.slane %v40, 0
    %v45 = vmul.f32 %v41, %v43
    %46 = vst [vmem:[#allocation6] sm:$0xff] %v45
    // Predicated region
    $region22: #{tpu_custom_call.1} parent=1 // pred_check
      _
    $region23: #{tpu_custom_call.1} parent=1 // pred_check_branch
      %48 = sbr.rel (0) target = $region25
    $region24: #{tpu_custom_call.1} parent=1 // pred_region
      %50 = vsyncadd [#allocation5], 0
      %s52 = sshll.u32 [#allocation6], 4
      %s53 = int_to_ptr.vmem [resolvable:$true] %s52
      %s54 = sshll.u32 %s4, 4
      %s55 = int_to_ptr.hbm [resolvable:$true] %s54
      %57 = dma.vmem_to_hbm [thread:$0]  %s53, 128, %s55, [#allocation5]
    $region25: #{tpu_custom_call.1} parent=1 // pred_fallthru
      _
    // Predicated region
    $region26: #{tpu_custom_call.1} parent=1 // pred_check
      _
    $region27: #{tpu_custom_call.1} parent=1 // pred_check_branch
      %59 = sbr.rel (0) target = $region29
    $region28: #{tpu_custom_call.1} parent=1 // pred_region
      %61 = dma.done [#allocation5], 128
    $region29: #{tpu_custom_call.1} parent=1 // pred_fallthru
      _
    %62 = vsyncpa [#allocation4], 1
    %63 = vsyncpa [#allocation5], 1

</llo_original>
